<compile_context>
chip_gen: v6e
topology: v6e:2x2x1
jax: 0.10.0
libtpu: 0.0.40
codegen_flags: <defaults>
</compile_context>

<pallas_src>
import functools

import jax
import jax.numpy as jnp
from jax import lax
from jax.experimental import pallas as pl
from jax.experimental.pallas import tpu as pltpu


# ---------------------------------------------------------------------------
# Helpers
# ---------------------------------------------------------------------------

def _round_up(x, m):
    return ((x + m - 1) // m) * m


def _sublane(dtype):
    # Rows per fully-packed sublane tile: 8 for 32-bit, 16 for bf16, 32 for int8.
    return max(8, 32 // jnp.dtype(dtype).itemsize)


def _pick_tb(n_tok, row_bytes, sub):
    """Token-block size.

    Big enough to amortize the ~0.35 us per-grid-step overhead, small enough
    that the double-buffered (tb, D) output slab stays <= ~8 MiB, and split so
    medium inputs still produce >= 2 grid steps (v7x dual-TC sharding).
    """
    tb = (8 << 20) // max(1, 2 * row_bytes)
    tb = int(max(sub, min(1024, tb)))
    tb = _round_up(tb, sub)
    n_tok_r = _round_up(max(1, n_tok), sub)
    if n_tok_r <= tb:
        if n_tok_r >= 2 * sub:
            tb = _round_up(-(-n_tok_r // 2), sub)   # at least 2 blocks
        else:
            tb = n_tok_r
    return tb


# ---------------------------------------------------------------------------
# Path 1: small vocab — VMEM-resident table, one-hot MXU gather
# ---------------------------------------------------------------------------

def _embed_onehot_kernel(ids_ref, table_ref, out_ref):
    # ids_ref:   (TB, 1) int32  — pre-clamped token ids (column layout)
    # table_ref: (V, D)         — full embedding table, VMEM-resident
    # out_ref:   (TB, D)        — gathered embedding rows
    v = table_ref.shape[0]
    tb = out_ref.shape[0]

    ids = ids_ref[...]                                              # (TB, 1)
    col_iota = lax.broadcasted_iota(jnp.int32, (tb, v), 1)          # (TB, V)
    # One-hot built directly in the table dtype (bf16-native MXU when bf16).
    one_hot = (ids == col_iota).astype(table_ref.dtype)             # (TB, V)

    gathered = jnp.dot(one_hot, table_ref[...],
                       preferred_element_type=jnp.float32)          # (TB, D)
    out_ref[...] = gathered.astype(out_ref.dtype)


def _onehot_call(flat_ids, table, *, tb, n_blocks, single_buffer_table):
    V, D = table.shape
    itemsize = jnp.dtype(table.dtype).itemsize
    n_pad = n_blocks * tb
    ids_col = flat_ids.reshape(n_pad, 1)

    if single_buffer_table:
        # Constant index map -> fetched once; one buffer instead of two.
        table_spec = pl.BlockSpec((V, D), lambda i: (0, 0),
                                  pipeline_mode=pl.Buffered(1))
        table_bufs = 1
    else:
        table_spec = pl.BlockSpec((V, D), lambda i: (0, 0))
        table_bufs = 2

    vmem_need = (table_bufs * V * D * itemsize    # resident table
                 + 2 * tb * D * itemsize          # double-buffered output tiles
                 + 2 * tb * 128 * 4)              # lane-padded ids tiles
    vmem_limit = int(min(48 << 20, max(24 << 20, vmem_need + (4 << 20))))

    cost = pl.CostEstimate(
        flops=2 * n_pad * V * D,                  # one-hot matmul gather
        transcendentals=0,
        bytes_accessed=(n_pad * 4                 # ids in
                        + V * D * itemsize        # table in (fetched once)
                        + n_pad * D * itemsize),  # embeddings out
    )

    return pl.pallas_call(
        _embed_onehot_kernel,
        out_shape=jax.ShapeDtypeStruct((n_pad, D), table.dtype),
        grid_spec=pltpu.PrefetchScalarGridSpec(
            num_scalar_prefetch=0,
            grid=(n_blocks,),
            in_specs=[
                pl.BlockSpec((tb, 1), lambda i: (i, 0)),   # ids for this block
                table_spec,                                 # full table, resident
            ],
            out_specs=pl.BlockSpec((tb, D), lambda i: (i, 0)),
        ),
        compiler_params=pltpu.CompilerParams(
            dimension_semantics=("parallel",),
            vmem_limit_bytes=vmem_limit,
        ),
        cost_estimate=cost,
    )(ids_col, table)


# ---------------------------------------------------------------------------
# Path 2: large vocab — table in HBM, manual DMA row-gather
# ---------------------------------------------------------------------------

def _embed_dma_kernel(ids_ref, table_hbm, out_ref, rows_vmem, sem, *, depth):
    # ids_ref:   (n_pad,) int32 in SMEM (scalar-prefetched, pre-clamped)
    # table_hbm: (V, DW) in HBM (memory_space=pl.ANY), 32-bit words per row
    # out_ref:   (TB, DW) VMEM output tile
    # rows_vmem: (TB, DW) VMEM scratch the rows are gathered into
    # sem:       (depth,) DMA semaphores — up to `depth` row copies in flight
    tb = out_ref.shape[0]
    base = pl.program_id(0) * tb

    def start(t):
        row = ids_ref[base + t]
        pltpu.make_async_copy(table_hbm.at[pl.ds(row, 1), :],
                              rows_vmem.at[pl.ds(t, 1), :],
                              sem.at[t & (depth - 1)]).start()

    def wait(t):
        pltpu.make_async_copy(table_hbm.at[pl.ds(0, 1), :],
                              rows_vmem.at[pl.ds(t, 1), :],
                              sem.at[t & (depth - 1)]).wait()

    # Prime the pipeline with up to `depth` outstanding row copies.
    @pl.loop(0, min(depth, tb))
    def _(t):
        start(t)

    # Steady state: retire row t, then issue row t + depth.
    @pl.loop(0, tb)
    def _(t):
        wait(t)

        @pl.when(t + depth < tb)
        def _():
            start(t + depth)

    out_ref[...] = rows_vmem[...]


def _dma_gather_call(flat_ids, table, *, tb, n_blocks, depth=8):
    V, D = table.shape
    dtype = table.dtype
    itemsize = jnp.dtype(dtype).itemsize
    n_pad = n_blocks * tb

    # View sub-32-bit tables as packed 32-bit words so every per-row DMA is
    # sublane-aligned (bf16 rows pack 2-per-sublane and would otherwise need
    # strided partial writes).
    if itemsize == 4:
        words, dw, word_dtype, pack = table, D, dtype, 1
    else:
        pack = 4 // itemsize
        assert D % pack == 0, "embedding_dim must be a multiple of 4 bytes"
        dw = D // pack
        words = lax.bitcast_convert_type(table.reshape(V, dw, pack), jnp.uint32)
        word_dtype = jnp.uint32

    row_bytes = dw * 4
    vmem_need = 3 * tb * row_bytes          # out tiles (x2) + gather scratch
    vmem_limit = int(min(48 << 20, max(16 << 20, vmem_need + (4 << 20))))

    cost = pl.CostEstimate(
        flops=0,
        transcendentals=0,
        bytes_accessed=n_pad * 4 + 2 * n_pad * row_bytes,
    )

    out_words = pl.pallas_call(
        functools.partial(_embed_dma_kernel, depth=depth),
        out_shape=jax.ShapeDtypeStruct((n_pad, dw), word_dtype),
        grid_spec=pltpu.PrefetchScalarGridSpec(
            num_scalar_prefetch=1,                      # ids -> SMEM
            grid=(n_blocks,),
            in_specs=[pl.BlockSpec(memory_space=pl.ANY)],   # table stays in HBM
            out_specs=pl.BlockSpec((tb, dw), lambda i, ids: (i, 0)),
            scratch_shapes=[
                pltpu.VMEM((tb, dw), word_dtype),
                pltpu.SemaphoreType.DMA((depth,)),
            ],
        ),
        compiler_params=pltpu.CompilerParams(
            dimension_semantics=("arbitrary",),
            vmem_limit_bytes=vmem_limit,
        ),
        cost_estimate=cost,
    )(flat_ids, words)

    if pack == 1:
        return out_words
    back = lax.bitcast_convert_type(out_words, dtype)   # (n_pad, dw, pack)
    return back.reshape(n_pad, D)


# ---------------------------------------------------------------------------
# Public wrapper — equivalent of nn.Embedding(vocab, dim)(x)
# ---------------------------------------------------------------------------

def embedding_lookup(ids, table):
    """Pallas equivalent of nn.Embedding lookup: ids (...,) -> (..., D)."""
    V, D = table.shape
    itemsize = jnp.dtype(table.dtype).itemsize
    lead_shape = ids.shape

    flat_ids = jnp.clip(ids.reshape(-1).astype(jnp.int32), 0, V - 1)
    n_tok = flat_ids.shape[0]

    table_bytes = V * D * itemsize
    use_onehot = (V <= 1024) and (table_bytes <= (16 << 20))

    if use_onehot:
        sub = _sublane(table.dtype)
        tb = _pick_tb(n_tok, D * itemsize, sub)
        n_blocks = pl.cdiv(n_tok, tb)
        n_pad = n_blocks * tb
        flat_ids = jnp.pad(flat_ids, (0, n_pad - n_tok))
        try:
            out = _onehot_call(flat_ids, table, tb=tb, n_blocks=n_blocks,
                               single_buffer_table=True)
        except Exception:
            # pl.Buffered(1) unsupported in this Pallas build: fall back to the
            # default-buffered (still constant-index) table spec.
            out = _onehot_call(flat_ids, table, tb=tb, n_blocks=n_blocks,
                               single_buffer_table=False)
    else:
        tb = _pick_tb(n_tok, D * itemsize, 8)   # output is 32-bit words -> 8
        n_blocks = pl.cdiv(n_tok, tb)
        n_pad = n_blocks * tb
        flat_ids = jnp.pad(flat_ids, (0, n_pad - n_tok))
        out = _dma_gather_call(flat_ids, table, tb=tb, n_blocks=n_blocks)

    return out[:n_tok].reshape(*lead_shape, D)


# ---------------------------------------------------------------------------
# Demo / correctness check
# ---------------------------------------------------------------------------

if __name__ == "__main__":
    key = jax.random.PRNGKey(0)
    k_w, k_x, k_w2, k_x2 = jax.random.split(key, 4)
    B, S = 2, 8

    # ---- Test 1: small vocab -> one-hot MXU path, f32 table ----------------
    vocab_size, embedding_dim = 32, 128
    # "pretrained_weight": deterministic init at bf16 granularity so the
    # one-hot matmul check is exact regardless of MXU f32-emulation passes.
    pretrained_weight = (
        jax.random.normal(k_w, (vocab_size, embedding_dim), dtype=jnp.float32)
        .astype(jnp.bfloat16).astype(jnp.float32))
    x = jax.random.randint(k_x, (B, S), 0, vocab_size, dtype=jnp.int32)

    out = jax.block_until_ready(embedding_lookup(x, pretrained_weight))
    ref = jnp.take(pretrained_weight, x, axis=0)
    assert out.shape == (B, S, embedding_dim), out.shape
    assert jnp.allclose(out, ref, rtol=1e-6, atol=1e-6), "one-hot path mismatch"

    # ---- Test 2: larger vocab -> manual DMA row-gather path, bf16 table ----
    vocab2, dim2 = 2048, 256
    table2 = jax.random.normal(k_w2, (vocab2, dim2),
                               dtype=jnp.float32).astype(jnp.bfloat16)
    x2 = jax.random.randint(k_x2, (B, S), 0, vocab2, dtype=jnp.int32)

    out2 = jax.block_until_ready(embedding_lookup(x2, table2))
    ref2 = jnp.take(table2, x2, axis=0)
    assert out2.shape == (B, S, dim2), out2.shape
    assert jnp.array_equal(out2, ref2), "DMA-gather path mismatch"

    print("KERNEL_OK")
</pallas_src>

<mosaic_0001>
module attributes {stable_mosaic.version = 11 : i64} {
  func.func @_embed_onehot_kernel(%arg0: i32, %arg1: memref<8x1xi32, #tpu.memory_space<vmem>>, %arg2: memref<32x128xf32, #tpu.memory_space<vmem>>, %arg3: memref<8x128xf32, #tpu.memory_space<vmem>>) attributes {dimension_semantics = [#tpu.dimension_semantics<parallel>], iteration_bounds = array<i64: 2>, scalar_prefetch = 0 : i64, scratch_operands = 0 : i64, tpu.core_type = #tpu.core_type<tc>, window_params = [{transform_indices = @transform_0, window_bounds = array<i64: 8, 1>}, {pipeline_mode = #tpu.pipeline_mode<synchronous>, transform_indices = @transform_1, window_bounds = array<i64: 32, 128>}, {transform_indices = @transform_2, window_bounds = array<i64: 8, 128>}]} {
    %c0 = arith.constant 0 : index
    %c0_0 = arith.constant 0 : index
    %0 = vector.load %arg1[%c0, %c0_0] : memref<8x1xi32, #tpu.memory_space<vmem>>, vector<8x1xi32>
    %1 = tpu.iota {dimensions = array<i32: 1>} : vector<8x32xi32>
    %2 = vector.broadcast %0 : vector<8x1xi32> to vector<8x32xi32>
    %3 = arith.cmpi eq, %2, %1 : vector<8x32xi32>
    %4 = arith.extui %3 : vector<8x32xi1> to vector<8x32xi32>
    %5 = arith.sitofp %4 : vector<8x32xi32> to vector<8x32xf32>
    %c0_1 = arith.constant 0 : index
    %c0_2 = arith.constant 0 : index
    %6 = vector.load %arg2[%c0_1, %c0_2] : memref<32x128xf32, #tpu.memory_space<vmem>>, vector<32x128xf32>
    %cst = arith.constant dense<0.000000e+00> : vector<8x128xf32>
    %7 = tpu.matmul %5, %6, %cst {dimension_numbers = #tpu.dot_dimension_numbers<[1], [0], [0], [1], [0, 0, 1, 1], [], []>} : vector<8x32xf32>, vector<32x128xf32>, vector<8x128xf32> -> vector<8x128xf32>
    %c0_3 = arith.constant 0 : index
    %c0_4 = arith.constant 0 : index
    %8 = vector.load %arg3[%c0_3, %c0_4] : memref<8x128xf32, #tpu.memory_space<vmem>>, vector<8x128xf32>
    tpu.vector_store %arg3[%c0_3, %c0_4], %7 {strides = array<i32>} : memref<8x128xf32, #tpu.memory_space<vmem>>, vector<8x128xf32>,
    return
  }
  func.func @transform_0(%arg0: i32) -> (i32, i32) {
    %c0_i32 = arith.constant 0 : i32
    %c0_i32_0 = arith.constant 0 : i32
    return %arg0, %c0_i32 : i32, i32
  }
  func.func @transform_1(%arg0: i32) -> (i32, i32) {
    %c0_i32 = arith.constant 0 : i32
    %c0_i32_0 = arith.constant 0 : i32
    %c0_i32_1 = arith.constant 0 : i32
    return %c0_i32, %c0_i32_0 : i32, i32
  }
  func.func @transform_2(%arg0: i32) -> (i32, i32) {
    %c0_i32 = arith.constant 0 : i32
    %c0_i32_0 = arith.constant 0 : i32
    return %arg0, %c0_i32 : i32, i32
  }
}

module attributes {stable_mosaic.version = 11 : i64} {
  func.func @_embed_onehot_kernel(%arg0: i32, %arg1: memref<8x1xi32, #tpu.memory_space<vmem>>, %arg2: memref<32x128xf32, #tpu.memory_space<vmem>>, %arg3: memref<8x128xf32, #tpu.memory_space<vmem>>) attributes {dimension_semantics = [#tpu.dimension_semantics<parallel>], iteration_bounds = array<i64: 2>, scalar_prefetch = 0 : i64, scratch_operands = 0 : i64, tpu.core_type = #tpu.core_type<tc>, window_params = [{transform_indices = @transform_0, window_bounds = array<i64: 8, 1>}, {pipeline_mode = #tpu.pipeline_mode<synchronous>, transform_indices = @transform_1, window_bounds = array<i64: 32, 128>}, {transform_indices = @transform_2, window_bounds = array<i64: 8, 128>}]} {
    %c0 = arith.constant 0 : index
    %c0_0 = arith.constant 0 : index
    %0 = vector.load %arg1[%c0, %c0_0] : memref<8x1xi32, #tpu.memory_space<vmem>>, vector<8x1xi32>
    %1 = tpu.iota {dimensions = array<i32: 1>} : vector<8x32xi32>
    %2 = vector.broadcast %0 : vector<8x1xi32> to vector<8x32xi32>
    %3 = arith.cmpi eq, %2, %1 : vector<8x32xi32>
    %4 = arith.extui %3 : vector<8x32xi1> to vector<8x32xi32>
    %5 = arith.sitofp %4 : vector<8x32xi32> to vector<8x32xf32>
    %c0_1 = arith.constant 0 : index
    %c0_2 = arith.constant 0 : index
    %6 = vector.load %arg2[%c0_1, %c0_2] : memref<32x128xf32, #tpu.memory_space<vmem>>, vector<32x128xf32>
    %cst = arith.constant dense<0.000000e+00> : vector<8x128xf32>
    %7 = tpu.matmul %5, %6, %cst {dimension_numbers = #tpu.dot_dimension_numbers<[1], [0], [0], [1], [0, 0, 1, 1], [], []>} : vector<8x32xf32>, vector<32x128xf32>, vector<8x128xf32> -> vector<8x128xf32>
    %c0_3 = arith.constant 0 : index
    %c0_4 = arith.constant 0 : index
    %8 = vector.load %arg3[%c0_3, %c0_4] : memref<8x128xf32, #tpu.memory_space<vmem>>, vector<8x128xf32>
    tpu.vector_store %arg3[%c0_3, %c0_4], %7 {strides = array<i32>} : memref<8x128xf32, #tpu.memory_space<vmem>>, vector<8x128xf32>,
    return
  }
  func.func @transform_0(%arg0: i32) -> (i32, i32) {
    %c0_i32 = arith.constant 0 : i32
    %c0_i32_0 = arith.constant 0 : i32
    return %arg0, %c0_i32 : i32, i32
  }
  func.func @transform_1(%arg0: i32) -> (i32, i32) {
    %c0_i32 = arith.constant 0 : i32
    %c0_i32_0 = arith.constant 0 : i32
    %c0_i32_1 = arith.constant 0 : i32
    return %c0_i32, %c0_i32_0 : i32, i32
  }
  func.func @transform_2(%arg0: i32) -> (i32, i32) {
    %c0_i32 = arith.constant 0 : i32
    %c0_i32_0 = arith.constant 0 : i32
    return %arg0, %c0_i32 : i32, i32
  }
}

</mosaic_0001>

<llo_original>
// kernel: tpu_custom_call.1
$region0: #{tpu_custom_call.1}
  #allocation0 [shape = 'u32[]', space=smem, size = 0x4, offset = 0x4, fixed_abs, tag = 'smem constant byte address 0x4 - core index']
  #allocation1 [shape = 'u32[144,128]{1,0:T(1,128)}', space=vmem, size = 0x12000, scoped, tag = 'internal scratch']
  %s0 = inlined_call_operand.vmem [shape: s32[16,1], index: 0, kind: input, shape index: {}]
  %s1 = inlined_call_operand.hbm [shape: f32[32,128], index: 1, kind: input, shape index: {}]
  %s2 = inlined_call_operand.hbm [shape: f32[16,128], index: 2, kind: output, shape index: {}]
  %s3 = sld [smem:[#allocation0]]
  $region45: #{tpu_custom_call.1} parent=0
    _
  %s5 = ssub.s32 1, %s3
  %s6 = scalar_select 0, %s5, %s3
  $region1: #{tpu_custom_call.1} parent=0
    #allocation2 [shape = 'u8[16384]{0}', space=vmem, size = 0x4000, scoped, tag = 'input window, operand 1, single buffered']
    #allocation3 [shape = 's32[2]{0}', space=sflag, size = 0x8, scoped, tag = 'scoped memory for tpu_custom_call.1']
    #allocation4 [shape = 's32[2]{0}', space=sflag, size = 0x8, scoped, tag = 'scoped memory for tpu_custom_call.1']
    #allocation5 [shape = 'u8[8192]{0}', space=vmem, size = 0x2000, scoped, tag = 'output window, operand 0']
    %7 = vsyncpa [#allocation3], 0
    %8 = vsyncpa [#allocation4], 0
    %s9 = scalar_lea.sflag [#allocation4], 1
    %10 = vsyncpa %s9, 0
    loop: start=0, step=1, limit=4
    $region2: #{tpu_custom_call.1} parent=1 // loop_pre_header
      _
    $region3: #{tpu_custom_call.1} parent=1 // loop_header
      %s12 = sphi 0, %s16
      %p13 = scmp.ge.s32.totalorder %s12, 4
      %s22 = sphi 0, %s24
      %s25 = sphi 0, %s22
      %s26 = sphi 0, %s25
      %s42 = sphi 0, %s26
      %s46 = sphi 0, %s46
      %s48 = sphi 0, %s46
      %s49 = sphi 0, %s48
      %s63 = sphi 0, %s49
      %s69 = sphi 0, %s71
      %s72 = sphi 0, %s69
      %s73 = sphi 0, %s72
      %s89 = sphi 0, %s73
    $region4: #{tpu_custom_call.1} parent=1 // loop_header_branch
      %15 = sbr.rel (%p13) target = $region8
    $region5: #{tpu_custom_call.1} parent=1 // loop_body
      %s17 = ssub.s32 %s12, 1
      %s18 = ssub.s32 %s12, 2
      %s19 = sadd.s32 %s12, 1
      %s20 = ssub.s32 %s12, %s19
      %p21 = scmp.eq.s32.totalorder %s20, 0
      %s23 = sadd.s32 %s22, 1
      %s24 = scalar_select %p21, %s22, %s23
      %p27 = pneg %p21
      %p28 = scmp.eq.s32.totalorder %s12, 1
      %p29 = por %p27, %p28
      %p30 = scmp.ne.s32.totalorder %s22, %s25
      %p31 = scmp.eq.s32.totalorder %s12, 0
      %p32 = por %p30, %p31
      %p33 = scmp.ne.s32.totalorder %s22, %s25
      %p34 = scmp.eq.s32.totalorder %s17, 1
      %p35 = por %p33, %p34
      %p36 = scmp.ne.s32.totalorder %s25, %s26
      %p37 = scmp.eq.s32.totalorder %s17, 0
      %p38 = por %p36, %p37
      %p39 = scmp.ne.s32.totalorder %s25, %s26
      %p40 = scmp.eq.s32.totalorder %s18, 1
      %p41 = por %p39, %p40
      %p43 = scmp.ne.s32.totalorder %s26, %s42
      %p44 = scmp.eq.s32.totalorder %s18, 0
      %p45 = por %p43, %p44
      %s47 = sadd.s32 %s46, 1
      %p50 = scmp.eq.s32.totalorder %s12, 1
      %p51 = scmp.ne.s32.totalorder %s46, %s48
      %p52 = scmp.eq.s32.totalorder %s12, 0
      %p53 = por %p51, %p52
      %p54 = scmp.ne.s32.totalorder %s46, %s48
      %p55 = scmp.eq.s32.totalorder %s17, 1
      %p56 = por %p54, %p55
      %p57 = scmp.ne.s32.totalorder %s48, %s49
      %p58 = scmp.eq.s32.totalorder %s17, 0
      %p59 = por %p57, %p58
      %p60 = scmp.ne.s32.totalorder %s48, %s49
      %p61 = scmp.eq.s32.totalorder %s18, 1
      %p62 = por %p60, %p61
      %p64 = scmp.ne.s32.totalorder %s49, %s63
      %p65 = scmp.eq.s32.totalorder %s18, 0
      %p66 = por %p64, %p65
      %s67 = ssub.s32 %s12, %s19
      %p68 = scmp.eq.s32.totalorder %s67, 0
      %s70 = sadd.s32 %s69, 1
      %s71 = scalar_select %p68, %s69, %s70
      %p74 = pneg %p68
      %p75 = scmp.eq.s32.totalorder %s12, 1
      %p76 = por %p74, %p75
      %p77 = scmp.ne.s32.totalorder %s69, %s72
      %p78 = scmp.eq.s32.totalorder %s12, 0
      %p79 = por %p77, %p78
      %p80 = scmp.ne.s32.totalorder %s69, %s72
      %p81 = scmp.eq.s32.totalorder %s17, 1
      %p82 = por %p80, %p81
      %p83 = scmp.ne.s32.totalorder %s72, %s73
      %p84 = scmp.eq.s32.totalorder %s17, 0
      %p85 = por %p83, %p84
      %p86 = scmp.ne.s32.totalorder %s72, %s73
      %p87 = scmp.eq.s32.totalorder %s18, 1
      %p88 = por %p86, %p87
      %p90 = scmp.ne.s32.totalorder %s73, %s89
      %p91 = scmp.eq.s32.totalorder %s18, 0
      %p92 = por %p90, %p91
      %p93 = scmp.le.s32.totalorder 1, %s12
      %p94 = scmp.lt.s32.totalorder %s12, 3
      %p95 = pnand %p93, %p94
      %p96 = pneg %p95
      // Predicated region
      $region9: #{tpu_custom_call.1} parent=5 // pred_check
        _
      $region10: #{tpu_custom_call.1} parent=5 // pred_check_branch
        %98 = sbr.rel (%p95) target = $region12
      $region11: #{tpu_custom_call.1} parent=5 // pred_region
        %s99 = ssub.s32 %s12, 1
        // Predicated region
        $region13: #{tpu_custom_call.1} parent=11 // pred_check
          %p100 = pneg %p59
        $region14: #{tpu_custom_call.1} parent=11 // pred_check_branch
          %102 = sbr.rel (%p100) target = $region16
        $region15: #{tpu_custom_call.1} parent=11 // pred_region
          %s104 = ssub.s32 512, 512
          %105 = vsyncadd [#allocation3], %s104
          %s106 = sshll.u32 [#allocation2], 4
          %s107 = int_to_ptr.vmem [resolvable:$true] %s106
          %112 = dma.hbm_to_vmem [thread:$0]  %s1, 512, %s107, [#allocation3], 128, 128, 8
        $region16: #{tpu_custom_call.1} parent=11 // pred_fallthru
          _
      $region12: #{tpu_custom_call.1} parent=5 // pred_fallthru
        _
      %p113 = scmp.lt.s32.totalorder %s12, 2
      // Predicated region
      $region17: #{tpu_custom_call.1} parent=5 // pred_check
        %p114 = pneg %p113
      $region18: #{tpu_custom_call.1} parent=5 // pred_check_branch
        %116 = sbr.rel (%p114) target = $region20
      $region19: #{tpu_custom_call.1} parent=5 // pred_region
        // Predicated region
        $region21: #{tpu_custom_call.1} parent=19 // pred_check
          %p117 = pneg %p32
        $region22: #{tpu_custom_call.1} parent=19 // pred_check_branch
          %119 = sbr.rel (%p117) target = $region24
        $region23: #{tpu_custom_call.1} parent=19 // pred_region
          %p120 = scmp.lt.s32.totalorder %s12, 1
          %s121 = scalar_select %p120, %s12, 1
          %s122 = smul.addr %s121, 8
          %s123 = scalar_lea.vmem %s0, %s122
        $region24: #{tpu_custom_call.1} parent=19 // pred_fallthru
          _
      $region20: #{tpu_custom_call.1} parent=5 // pred_fallthru
        _
      %p124 = scmp.le.s32.totalorder 1, %s12
      %p125 = scmp.lt.s32.totalorder %s12, 3
      %p126 = pnand %p124, %p125
      %p127 = pneg %p126
      // Predicated region
      $region25: #{tpu_custom_call.1} parent=5 // pred_check
        _
      $region26: #{tpu_custom_call.1} parent=5 // pred_check_branch
        %129 = sbr.rel (%p126) target = $region28
      $region27: #{tpu_custom_call.1} parent=5 // pred_region
        %s130 = ssub.s32 %s12, 1
        // Predicated region
        $region29: #{tpu_custom_call.1} parent=27 // pred_check
          %p131 = pneg %p59
        $region30: #{tpu_custom_call.1} parent=27 // pred_check_branch
          %133 = sbr.rel (%p131) target = $region32
        $region31: #{tpu_custom_call.1} parent=27 // pred_region
          %134 = dma.done [#allocation3], 512
        $region32: #{tpu_custom_call.1} parent=27 // pred_fallthru
          _
        %p135 = scmp.lt.s32.totalorder %s17, 1
        %s136 = scalar_select %p135, %s17, 1
        %s137 = smul.addr %s136, 8
        %s138 = scalar_lea.vmem %s0, %s137
        %p139 = pneg %p38
        %p140 = pneg %p35
        %p141 = pneg %p59
        %p142 = pneg %p56
        %p143 = pneg %p85
        %p144 = pneg %p82
        %s145 = sand.u32 %s72, 1
        %s146 = scalar_lea.sflag [#allocation4], %s145
        %s147 = sand.u32 %s72, 1
        %s148 = smul.addr %s147, 8
        %s149 = scalar_lea.vmem [#allocation5], %s148
        %p150 = scmp.lt.s32.totalorder %s17, 1
        %s151 = scalar_select %p150, %s17, 1
        %s152 = smul.addr %s151, 8
        %s153 = scalar_lea.vmem %s0, %s152
        %v154 = vld [vmem:[%s153] sm:$0xff]
        %v155 = vlaneseq
        %v156 = vand.u32 %v155, 127
        %157 = vset.pattern.permute.xlu0 0
        %158 = vperm.xlu0 %157, %v154
        %v159 = vpop.permute.xlu0 %158
        %vm160 = vcmp.eq.s32.totalorder %v159, %v156
        %v161 = vsel %vm160, 1, 0
        %v162 = vcvt.s32.f32 %v161
        %v163 = vld [vmem:[#allocation2] sm:$0xff]
        %v164 = vld [vmem:[#allocation2 + $0x8] sm:$0xff]
        %v165 = vld [vmem:[#allocation2 + $0x10] sm:$0xff]
        %v166 = vld [vmem:[#allocation2 + $0x18] sm:$0xff]
        %vm167 = vcmask 261120
        %v169 = vsel %vm167, %v162, 0
        %171 = vmatprep.subr.mxu0 0.0
        %172 = vmatpush1.msra.mxu0 0.0
        %173 = vmatprep.subr.mxu0 0.0
        %174 = vmatpush1.msra.mxu0 0.0
        %175 = vmatprep.subr.mxu0 0.0
        %176 = vmatpush1.msra.mxu0 0.0
        %177 = vmatprep.subr.mxu0 0.0
        %178 = vmatpush1.msra.mxu0 0.0
        %179 = vmatprep.subr.mxu0 0.0
        %180 = vmatpush1.msra.mxu0 0.0
        %181 = vmatprep.subr.mxu0 0.0
        %182 = vmatpush1.msra.mxu0 0.0
        %183 = vmatprep.subr.mxu0 0.0
        %184 = vmatpush1.msra.mxu0 0.0
        %185 = vmatprep.subr.mxu0 0.0
        %186 = vmatpush1.msra.mxu0 0.0
        %187 = vmatprep.subr.mxu0 0.0
        %188 = vmatpush1.msra.mxu0 0.0
        %189 = vmatprep.subr.mxu0 0.0
        %190 = vmatpush1.msra.mxu0 0.0
        %191 = vmatprep.subr.mxu0 0.0
        %192 = vmatpush1.msra.mxu0 0.0
        %193 = vmatprep.subr.mxu0 0.0
        %194 = vmatpush1.msra.mxu0 0.0
        %195 = vmatprep.subr.mxu0 0.0
        %196 = vmatpush1.msra.mxu0 %v166
        %197 = vmatprep.subr.mxu0 0.0
        %198 = vmatpush1.msra.mxu0 %v165
        %199 = vmatprep.subr.mxu0 0.0
        %200 = vmatpush1.msra.mxu0 %v164
        %201 = vmatprep.subr.mxu0 0.0
        %202 = vmatpush1.msra.mxu0 %v163
        %203 = vmatprep.subr.mxu0 0.0
        %204 = vmatpush2.msra.mxu0 0.0
        %205 = vmatprep.subr.mxu0 0.0
        %206 = vmatpush2.msra.mxu0 0.0
        %207 = vmatprep.subr.mxu0 0.0
        %208 = vmatpush2.msra.mxu0 0.0
        %209 = vmatprep.subr.mxu0 0.0
        %210 = vmatpush2.msra.mxu0 0.0
        %211 = vmatprep.subr.mxu0 0.0
        %212 = vmatpush2.msra.mxu0 0.0
        %213 = vmatprep.subr.mxu0 0.0
        %214 = vmatpush2.msra.mxu0 0.0
        %215 = vmatprep.subr.mxu0 0.0
        %216 = vmatpush2.msra.mxu0 0.0
        %217 = vmatprep.subr.mxu0 0.0
        %218 = vmatpush2.msra.mxu0 0.0
        %219 = vmatprep.subr.mxu0 0.0
        %220 = vmatpush2.msra.mxu0 0.0
        %221 = vmatprep.subr.mxu0 0.0
        %222 = vmatpush2.msra.mxu0 0.0
        %223 = vmatprep.subr.mxu0 0.0
        %224 = vmatpush2.msra.mxu0 0.0
        %225 = vmatprep.subr.mxu0 0.0
        %226 = vmatpush2.msra.mxu0 0.0
        %227 = vmatprep.subr.mxu0 0.0
        %228 = vmatpush2.msra.mxu0 0.0
        %229 = vmatprep.subr.mxu0 0.0
        %230 = vmatpush2.msra.mxu0 0.0
        %231 = vmatprep.subr.mxu0 0.0
        %232 = vmatpush2.msra.mxu0 0.0
        %233 = vmatprep.subr.mxu0 0.0
        %234 = vmatpush2.msra.mxu0 0.0
        %235 = vmatprep.mubr.f32.mxu0 0.0
        %236 = vmatmul.mubr.f32.gmra.mxu0 %v169
        %v237 = vpop.f32.mrf.mxu0
        %v238 = vadd.f32 0.0, %v237
        %v239 = vpop.f32.mrf.mxu0
        %240 = vdwg.mxu0
        %241 = vst [vmem:[%s149] sm:$0xff] %v238
        %s242 = sand.u32 %s72, 1
        %s243 = scalar_lea.sflag [#allocation4], %s242
        %s244 = sand.u32 %s72, 1
        %s245 = smul.addr %s244, 8
        %s246 = scalar_lea.vmem [#allocation5], %s245
        // Predicated region
        $region33: #{tpu_custom_call.1} parent=27 // pred_check
          %p247 = pneg %p82
        $region34: #{tpu_custom_call.1} parent=27 // pred_check_branch
          %249 = sbr.rel (%p247) target = $region36
        $region35: #{tpu_custom_call.1} parent=27 // pred_region
          %s251 = ssub.s32 128, 128
          %252 = vsyncadd %s243, %s251
          %s253 = smul.addr %s17, 128
          %s254 = scalar_lea.hbm %s2, %s253
          %s256 = sshll.u32 %s246, 4
          %s257 = int_to_ptr.vmem [resolvable:$true] %s256
          %259 = dma.vmem_to_hbm [thread:$0]  %s257, 128, %s254, %s243
        $region36: #{tpu_custom_call.1} parent=27 // pred_fallthru
          _
      $region28: #{tpu_custom_call.1} parent=5 // pred_fallthru
        _
      %p260 = scmp.le.s32.totalorder 2, %s12
      // Predicated region
      $region37: #{tpu_custom_call.1} parent=5 // pred_check
        %p261 = pneg %p260
      $region38: #{tpu_custom_call.1} parent=5 // pred_check_branch
        %263 = sbr.rel (%p261) target = $region40
      $region39: #{tpu_custom_call.1} parent=5 // pred_region
        %s264 = ssub.s32 %s12, 2
        // Predicated region
        $region41: #{tpu_custom_call.1} parent=39 // pred_check
          %p265 = pneg %p88
        $region42: #{tpu_custom_call.1} parent=39 // pred_check_branch
          %267 = sbr.rel (%p265) target = $region44
        $region43: #{tpu_custom_call.1} parent=39 // pred_region
          %s268 = sand.u32 %s73, 1
          %s269 = scalar_lea.sflag [#allocation4], %s268
          %s270 = sand.u32 %s73, 1
          %s271 = smul.addr %s270, 8
          %s272 = scalar_lea.vmem [#allocation5], %s271
          %273 = dma.done %s269, 128
        $region44: #{tpu_custom_call.1} parent=39 // pred_fallthru
          _
      $region40: #{tpu_custom_call.1} parent=5 // pred_fallthru
        _
    $region6: #{tpu_custom_call.1} parent=1 // loop_footer
      %s16 = sadd.s32 1, %s12
    $region7: #{tpu_custom_call.1} parent=1 // loop_footer_branch
      %11 = sbr.rel target = $region3
    $region8: #{tpu_custom_call.1} parent=1 // loop_exit
      _
    %274 = vsyncpa [#allocation3], 1
    %s275 = scalar_lea.sflag [#allocation3], 1
    %276 = vsyncpa %s275, 1
    %277 = vsyncpa [#allocation4], 1
    %s278 = scalar_lea.sflag [#allocation4], 1
    %279 = vsyncpa %s278, 1

// kernel: tpu_custom_call.1
$region0: #{tpu_custom_call.1}
  #allocation0 [shape = 'u32[]', space=smem, size = 0x4, offset = 0x4, fixed_abs, tag = 'smem constant byte address 0x4 - core index']
  #allocation1 [shape = 'u32[144,128]{1,0:T(1,128)}', space=vmem, size = 0x12000, scoped, tag = 'internal scratch']
  %s0 = inlined_call_operand.vmem [shape: s32[16,1], index: 0, kind: input, shape index: {}]
  %s1 = inlined_call_operand.hbm [shape: f32[32,128], index: 1, kind: input, shape index: {}]
  %s2 = inlined_call_operand.hbm [shape: f32[16,128], index: 2, kind: output, shape index: {}]
  %s3 = sld [smem:[#allocation0]]
  $region45: #{tpu_custom_call.1} parent=0
    _
  %s5 = ssub.s32 1, %s3
  %s6 = scalar_select 0, %s5, %s3
  $region1: #{tpu_custom_call.1} parent=0
    #allocation2 [shape = 'u8[16384]{0}', space=vmem, size = 0x4000, scoped, tag = 'input window, operand 1, single buffered']
    #allocation3 [shape = 's32[2]{0}', space=sflag, size = 0x8, scoped, tag = 'scoped memory for tpu_custom_call.1']
    #allocation4 [shape = 's32[2]{0}', space=sflag, size = 0x8, scoped, tag = 'scoped memory for tpu_custom_call.1']
    #allocation5 [shape = 'u8[8192]{0}', space=vmem, size = 0x2000, scoped, tag = 'output window, operand 0']
    %7 = vsyncpa [#allocation3], 0
    %8 = vsyncpa [#allocation4], 0
    %s9 = scalar_lea.sflag [#allocation4], 1
    %10 = vsyncpa %s9, 0
    loop: start=0, step=1, limit=4
    $region2: #{tpu_custom_call.1} parent=1 // loop_pre_header
      _
    $region3: #{tpu_custom_call.1} parent=1 // loop_header
      %s12 = sphi 0, %s16
      %p13 = scmp.ge.s32.totalorder %s12, 4
      %s22 = sphi 0, %s24
      %s25 = sphi 0, %s22
      %s26 = sphi 0, %s25
      %s42 = sphi 0, %s26
      %s46 = sphi 0, %s46
      %s48 = sphi 0, %s46
      %s49 = sphi 0, %s48
      %s63 = sphi 0, %s49
      %s69 = sphi 0, %s71
      %s72 = sphi 0, %s69
      %s73 = sphi 0, %s72
      %s89 = sphi 0, %s73
    $region4: #{tpu_custom_call.1} parent=1 // loop_header_branch
      %15 = sbr.rel (%p13) target = $region8
    $region5: #{tpu_custom_call.1} parent=1 // loop_body
      %s17 = ssub.s32 %s12, 1
      %s18 = ssub.s32 %s12, 2
      %s19 = sadd.s32 %s12, 1
      %s20 = ssub.s32 %s12, %s19
      %p21 = scmp.eq.s32.totalorder %s20, 0
      %s23 = sadd.s32 %s22, 1
      %s24 = scalar_select %p21, %s22, %s23
      %p27 = pneg %p21
      %p28 = scmp.eq.s32.totalorder %s12, 1
      %p29 = por %p27, %p28
      %p30 = scmp.ne.s32.totalorder %s22, %s25
      %p31 = scmp.eq.s32.totalorder %s12, 0
      %p32 = por %p30, %p31
      %p33 = scmp.ne.s32.totalorder %s22, %s25
      %p34 = scmp.eq.s32.totalorder %s17, 1
      %p35 = por %p33, %p34
      %p36 = scmp.ne.s32.totalorder %s25, %s26
      %p37 = scmp.eq.s32.totalorder %s17, 0
      %p38 = por %p36, %p37
      %p39 = scmp.ne.s32.totalorder %s25, %s26
      %p40 = scmp.eq.s32.totalorder %s18, 1
      %p41 = por %p39, %p40
      %p43 = scmp.ne.s32.totalorder %s26, %s42
      %p44 = scmp.eq.s32.totalorder %s18, 0
      %p45 = por %p43, %p44
      %s47 = sadd.s32 %s46, 1
      %p50 = scmp.eq.s32.totalorder %s12, 1
      %p51 = scmp.ne.s32.totalorder %s46, %s48
      %p52 = scmp.eq.s32.totalorder %s12, 0
      %p53 = por %p51, %p52
      %p54 = scmp.ne.s32.totalorder %s46, %s48
      %p55 = scmp.eq.s32.totalorder %s17, 1
      %p56 = por %p54, %p55
      %p57 = scmp.ne.s32.totalorder %s48, %s49
      %p58 = scmp.eq.s32.totalorder %s17, 0
      %p59 = por %p57, %p58
      %p60 = scmp.ne.s32.totalorder %s48, %s49
      %p61 = scmp.eq.s32.totalorder %s18, 1
      %p62 = por %p60, %p61
      %p64 = scmp.ne.s32.totalorder %s49, %s63
      %p65 = scmp.eq.s32.totalorder %s18, 0
      %p66 = por %p64, %p65
      %s67 = ssub.s32 %s12, %s19
      %p68 = scmp.eq.s32.totalorder %s67, 0
      %s70 = sadd.s32 %s69, 1
      %s71 = scalar_select %p68, %s69, %s70
      %p74 = pneg %p68
      %p75 = scmp.eq.s32.totalorder %s12, 1
      %p76 = por %p74, %p75
      %p77 = scmp.ne.s32.totalorder %s69, %s72
      %p78 = scmp.eq.s32.totalorder %s12, 0
      %p79 = por %p77, %p78
      %p80 = scmp.ne.s32.totalorder %s69, %s72
      %p81 = scmp.eq.s32.totalorder %s17, 1
      %p82 = por %p80, %p81
      %p83 = scmp.ne.s32.totalorder %s72, %s73
      %p84 = scmp.eq.s32.totalorder %s17, 0
      %p85 = por %p83, %p84
      %p86 = scmp.ne.s32.totalorder %s72, %s73
      %p87 = scmp.eq.s32.totalorder %s18, 1
      %p88 = por %p86, %p87
      %p90 = scmp.ne.s32.totalorder %s73, %s89
      %p91 = scmp.eq.s32.totalorder %s18, 0
      %p92 = por %p90, %p91
      %p93 = scmp.le.s32.totalorder 1, %s12
      %p94 = scmp.lt.s32.totalorder %s12, 3
      %p95 = pnand %p93, %p94
      %p96 = pneg %p95
      // Predicated region
      $region9: #{tpu_custom_call.1} parent=5 // pred_check
        _
      $region10: #{tpu_custom_call.1} parent=5 // pred_check_branch
        %98 = sbr.rel (%p95) target = $region12
      $region11: #{tpu_custom_call.1} parent=5 // pred_region
        %s99 = ssub.s32 %s12, 1
        // Predicated region
        $region13: #{tpu_custom_call.1} parent=11 // pred_check
          %p100 = pneg %p59
        $region14: #{tpu_custom_call.1} parent=11 // pred_check_branch
          %102 = sbr.rel (%p100) target = $region16
        $region15: #{tpu_custom_call.1} parent=11 // pred_region
          %s104 = ssub.s32 512, 512
          %105 = vsyncadd [#allocation3], %s104
          %s106 = sshll.u32 [#allocation2], 4
          %s107 = int_to_ptr.vmem [resolvable:$true] %s106
          %112 = dma.hbm_to_vmem [thread:$0]  %s1, 512, %s107, [#allocation3], 128, 128, 8
        $region16: #{tpu_custom_call.1} parent=11 // pred_fallthru
          _
      $region12: #{tpu_custom_call.1} parent=5 // pred_fallthru
        _
      %p113 = scmp.lt.s32.totalorder %s12, 2
      // Predicated region
      $region17: #{tpu_custom_call.1} parent=5 // pred_check
        %p114 = pneg %p113
      $region18: #{tpu_custom_call.1} parent=5 // pred_check_branch
        %116 = sbr.rel (%p114) target = $region20
      $region19: #{tpu_custom_call.1} parent=5 // pred_region
        // Predicated region
        $region21: #{tpu_custom_call.1} parent=19 // pred_check
          %p117 = pneg %p32
        $region22: #{tpu_custom_call.1} parent=19 // pred_check_branch
          %119 = sbr.rel (%p117) target = $region24
        $region23: #{tpu_custom_call.1} parent=19 // pred_region
          %p120 = scmp.lt.s32.totalorder %s12, 1
          %s121 = scalar_select %p120, %s12, 1
          %s122 = smul.addr %s121, 8
          %s123 = scalar_lea.vmem %s0, %s122
        $region24: #{tpu_custom_call.1} parent=19 // pred_fallthru
          _
      $region20: #{tpu_custom_call.1} parent=5 // pred_fallthru
        _
      %p124 = scmp.le.s32.totalorder 1, %s12
      %p125 = scmp.lt.s32.totalorder %s12, 3
      %p126 = pnand %p124, %p125
      %p127 = pneg %p126
      // Predicated region
      $region25: #{tpu_custom_call.1} parent=5 // pred_check
        _
      $region26: #{tpu_custom_call.1} parent=5 // pred_check_branch
        %129 = sbr.rel (%p126) target = $region28
      $region27: #{tpu_custom_call.1} parent=5 // pred_region
        %s130 = ssub.s32 %s12, 1
        // Predicated region
        $region29: #{tpu_custom_call.1} parent=27 // pred_check
          %p131 = pneg %p59
        $region30: #{tpu_custom_call.1} parent=27 // pred_check_branch
          %133 = sbr.rel (%p131) target = $region32
        $region31: #{tpu_custom_call.1} parent=27 // pred_region
          %134 = dma.done [#allocation3], 512
        $region32: #{tpu_custom_call.1} parent=27 // pred_fallthru
          _
        %p135 = scmp.lt.s32.totalorder %s17, 1
        %s136 = scalar_select %p135, %s17, 1
        %s137 = smul.addr %s136, 8
        %s138 = scalar_lea.vmem %s0, %s137
        %p139 = pneg %p38
        %p140 = pneg %p35
        %p141 = pneg %p59
        %p142 = pneg %p56
        %p143 = pneg %p85
        %p144 = pneg %p82
        %s145 = sand.u32 %s72, 1
        %s146 = scalar_lea.sflag [#allocation4], %s145
        %s147 = sand.u32 %s72, 1
        %s148 = smul.addr %s147, 8
        %s149 = scalar_lea.vmem [#allocation5], %s148
        %p150 = scmp.lt.s32.totalorder %s17, 1
        %s151 = scalar_select %p150, %s17, 1
        %s152 = smul.addr %s151, 8
        %s153 = scalar_lea.vmem %s0, %s152
        %v154 = vld [vmem:[%s153] sm:$0xff]
        %v155 = vlaneseq
        %v156 = vand.u32 %v155, 127
        %157 = vset.pattern.permute.xlu0 0
        %158 = vperm.xlu0 %157, %v154
        %v159 = vpop.permute.xlu0 %158
        %vm160 = vcmp.eq.s32.totalorder %v159, %v156
        %v161 = vsel %vm160, 1, 0
        %v162 = vcvt.s32.f32 %v161
        %v163 = vld [vmem:[#allocation2] sm:$0xff]
        %v164 = vld [vmem:[#allocation2 + $0x8] sm:$0xff]
        %v165 = vld [vmem:[#allocation2 + $0x10] sm:$0xff]
        %v166 = vld [vmem:[#allocation2 + $0x18] sm:$0xff]
        %vm167 = vcmask 261120
        %v169 = vsel %vm167, %v162, 0
        %171 = vmatprep.subr.mxu0 0.0
        %172 = vmatpush1.msra.mxu0 0.0
        %173 = vmatprep.subr.mxu0 0.0
        %174 = vmatpush1.msra.mxu0 0.0
        %175 = vmatprep.subr.mxu0 0.0
        %176 = vmatpush1.msra.mxu0 0.0
        %177 = vmatprep.subr.mxu0 0.0
        %178 = vmatpush1.msra.mxu0 0.0
        %179 = vmatprep.subr.mxu0 0.0
        %180 = vmatpush1.msra.mxu0 0.0
        %181 = vmatprep.subr.mxu0 0.0
        %182 = vmatpush1.msra.mxu0 0.0
        %183 = vmatprep.subr.mxu0 0.0
        %184 = vmatpush1.msra.mxu0 0.0
        %185 = vmatprep.subr.mxu0 0.0
        %186 = vmatpush1.msra.mxu0 0.0
        %187 = vmatprep.subr.mxu0 0.0
        %188 = vmatpush1.msra.mxu0 0.0
        %189 = vmatprep.subr.mxu0 0.0
        %190 = vmatpush1.msra.mxu0 0.0
        %191 = vmatprep.subr.mxu0 0.0
        %192 = vmatpush1.msra.mxu0 0.0
        %193 = vmatprep.subr.mxu0 0.0
        %194 = vmatpush1.msra.mxu0 0.0
        %195 = vmatprep.subr.mxu0 0.0
        %196 = vmatpush1.msra.mxu0 %v166
        %197 = vmatprep.subr.mxu0 0.0
        %198 = vmatpush1.msra.mxu0 %v165
        %199 = vmatprep.subr.mxu0 0.0
        %200 = vmatpush1.msra.mxu0 %v164
        %201 = vmatprep.subr.mxu0 0.0
        %202 = vmatpush1.msra.mxu0 %v163
        %203 = vmatprep.subr.mxu0 0.0
        %204 = vmatpush2.msra.mxu0 0.0
        %205 = vmatprep.subr.mxu0 0.0
        %206 = vmatpush2.msra.mxu0 0.0
        %207 = vmatprep.subr.mxu0 0.0
        %208 = vmatpush2.msra.mxu0 0.0
        %209 = vmatprep.subr.mxu0 0.0
        %210 = vmatpush2.msra.mxu0 0.0
        %211 = vmatprep.subr.mxu0 0.0
        %212 = vmatpush2.msra.mxu0 0.0
        %213 = vmatprep.subr.mxu0 0.0
        %214 = vmatpush2.msra.mxu0 0.0
        %215 = vmatprep.subr.mxu0 0.0
        %216 = vmatpush2.msra.mxu0 0.0
        %217 = vmatprep.subr.mxu0 0.0
        %218 = vmatpush2.msra.mxu0 0.0
        %219 = vmatprep.subr.mxu0 0.0
        %220 = vmatpush2.msra.mxu0 0.0
        %221 = vmatprep.subr.mxu0 0.0
        %222 = vmatpush2.msra.mxu0 0.0
        %223 = vmatprep.subr.mxu0 0.0
        %224 = vmatpush2.msra.mxu0 0.0
        %225 = vmatprep.subr.mxu0 0.0
        %226 = vmatpush2.msra.mxu0 0.0
        %227 = vmatprep.subr.mxu0 0.0
        %228 = vmatpush2.msra.mxu0 0.0
        %229 = vmatprep.subr.mxu0 0.0
        %230 = vmatpush2.msra.mxu0 0.0
        %231 = vmatprep.subr.mxu0 0.0
        %232 = vmatpush2.msra.mxu0 0.0
        %233 = vmatprep.subr.mxu0 0.0
        %234 = vmatpush2.msra.mxu0 0.0
        %235 = vmatprep.mubr.f32.mxu0 0.0
        %236 = vmatmul.mubr.f32.gmra.mxu0 %v169
        %v237 = vpop.f32.mrf.mxu0
        %v238 = vadd.f32 0.0, %v237
        %v239 = vpop.f32.mrf.mxu0
        %240 = vdwg.mxu0
        %241 = vst [vmem:[%s149] sm:$0xff] %v238
        %s242 = sand.u32 %s72, 1
        %s243 = scalar_lea.sflag [#allocation4], %s242
        %s244 = sand.u32 %s72, 1
        %s245 = smul.addr %s244, 8
        %s246 = scalar_lea.vmem [#allocation5], %s245
        // Predicated region
        $region33: #{tpu_custom_call.1} parent=27 // pred_check
          %p247 = pneg %p82
        $region34: #{tpu_custom_call.1} parent=27 // pred_check_branch
          %249 = sbr.rel (%p247) target = $region36
        $region35: #{tpu_custom_call.1} parent=27 // pred_region
          %s251 = ssub.s32 128, 128
          %252 = vsyncadd %s243, %s251
          %s253 = smul.addr %s17, 128
          %s254 = scalar_lea.hbm %s2, %s253
          %s256 = sshll.u32 %s246, 4
          %s257 = int_to_ptr.vmem [resolvable:$true] %s256
          %259 = dma.vmem_to_hbm [thread:$0]  %s257, 128, %s254, %s243
        $region36: #{tpu_custom_call.1} parent=27 // pred_fallthru
          _
      $region28: #{tpu_custom_call.1} parent=5 // pred_fallthru
        _
      %p260 = scmp.le.s32.totalorder 2, %s12
      // Predicated region
      $region37: #{tpu_custom_call.1} parent=5 // pred_check
        %p261 = pneg %p260
      $region38: #{tpu_custom_call.1} parent=5 // pred_check_branch
        %263 = sbr.rel (%p261) target = $region40
      $region39: #{tpu_custom_call.1} parent=5 // pred_region
        %s264 = ssub.s32 %s12, 2
        // Predicated region
        $region41: #{tpu_custom_call.1} parent=39 // pred_check
          %p265 = pneg %p88
        $region42: #{tpu_custom_call.1} parent=39 // pred_check_branch
          %267 = sbr.rel (%p265) target = $region44
        $region43: #{tpu_custom_call.1} parent=39 // pred_region
          %s268 = sand.u32 %s73, 1
          %s269 = scalar_lea.sflag [#allocation4], %s268
          %s270 = sand.u32 %s73, 1
          %s271 = smul.addr %s270, 8
          %s272 = scalar_lea.vmem [#allocation5], %s271
          %273 = dma.done %s269, 128
        $region44: #{tpu_custom_call.1} parent=39 // pred_fallthru
          _
      $region40: #{tpu_custom_call.1} parent=5 // pred_fallthru
        _
    $region6: #{tpu_custom_call.1} parent=1 // loop_footer
      %s16 = sadd.s32 1, %s12
    $region7: #{tpu_custom_call.1} parent=1 // loop_footer_branch
      %11 = sbr.rel target = $region3
    $region8: #{tpu_custom_call.1} parent=1 // loop_exit
      _
    %274 = vsyncpa [#allocation3], 1
    %s275 = scalar_lea.sflag [#allocation3], 1
    %276 = vsyncpa %s275, 1
    %277 = vsyncpa [#allocation4], 1
    %s278 = scalar_lea.sflag [#allocation4], 1
    %279 = vsyncpa %s278, 1

</llo_original>
